<compile_context>
chip_gen: v6e
topology: v6e:2x2x1
jax: 0.10.0
libtpu: 0.0.40
codegen_flags: <defaults>
</compile_context>

<pallas_src>
import jax
import jax.numpy as jnp
from jax.experimental import pallas as pl
from jax.experimental.pallas import tpu as pltpu


def _round_up(x, m):
    return ((x + m - 1) // m) * m


def _round_down(x, m):
    return (x // m) * m


def _residual_linear_kernel(x_ref, w_ref, b_ref, o_ref):
    # x_ref: (TM, D)   w_ref: (D, D)   b_ref: (1, D)   o_ref: (TM, D)
    x = x_ref[...]
    # fn(x) = Linear(D, D): matmul in the weight's dtype (bf16 by default),
    # accumulate in f32 on the MXU.
    y = jnp.dot(x.astype(w_ref.dtype), w_ref[...],
                preferred_element_type=jnp.float32)
    y = y + b_ref[...].astype(jnp.float32)
    # Residual add in f32, single cast to the output dtype.
    o_ref[...] = (y + x.astype(jnp.float32)).astype(o_ref.dtype)


def residual_add_linear(x, w, b, *, tm=1024, matmul_dtype=jnp.bfloat16,
                        vmem_tile_budget_bytes=24 * 1024 * 1024):
    """ResidualAdd(Linear(D, D)) forward: returns Linear(x) + x.

    x: (B, S, D); w: (D, D); b: (D,).
    tm: target rows per tile (multiples of 128 recommended).
    matmul_dtype: dtype for the MXU matmul (bf16 default); accumulation,
                  bias and residual stay f32.  Pass None to matmul in
                  w.dtype.  Output dtype follows x.dtype (pass bf16 x for
                  bf16 I/O on mem-bound generations).
    """
    B, S, D = x.shape
    N = B * S
    x_bytes = jnp.dtype(x.dtype).itemsize

    # ---- Tile-size selection (no HBM padding; ragged tail is masked) ----
    if N <= tm:
        TM = N  # single full-extent block: legal for any N
    else:
        TM = _round_down(tm, 128) or 128
        # Keep ~>=8 grid steps so v7x's two TensorCores both get work and
        # the in/out pipeline stays busy (neutral on v5e/v6e).
        TM = min(TM, max(128, _round_up(pl.cdiv(N, 8), 128)))
        # Keep double-buffered in+out tiles under the VMEM budget
        # (important on v7x: 64 MiB physical VMEM).
        per_row = 2 * D * x_bytes * 2          # (in + out) tiles x 2 buffers
        max_rows = max(128, _round_down(vmem_tile_budget_bytes // per_row, 128))
        TM = max(8, min(TM, max_rows))

    grid = (pl.cdiv(N, TM),)

    x2 = x.reshape(N, D)
    b2 = b.reshape(1, D)
    w_m = w if (matmul_dtype is None or w.dtype == matmul_dtype) else w.astype(matmul_dtype)

    # ---- VMEM limit: actual footprint + margin, capped for v7x ----
    tiles_bytes = 2 * TM * D * x_bytes * 2                       # in + out, double-buffered
    resident_bytes = 2 * (D * D + D) * jnp.dtype(w_m.dtype).itemsize
    vmem_limit = max(16 * 1024 * 1024,
                     min(int(1.25 * (tiles_bytes + resident_bytes)) + (4 << 20),
                         64 * 1024 * 1024))

    bytes_accessed = (2 * N * D * x_bytes
                      + D * D * jnp.dtype(w_m.dtype).itemsize
                      + D * jnp.dtype(b.dtype).itemsize)
    cost = pl.CostEstimate(flops=2 * N * D * D + 2 * N * D,
                           transcendentals=0,
                           bytes_accessed=bytes_accessed)

    out = pl.pallas_call(
        _residual_linear_kernel,
        out_shape=jax.ShapeDtypeStruct((N, D), x.dtype),
        grid_spec=pltpu.PrefetchScalarGridSpec(
            num_scalar_prefetch=0,
            grid=grid,
            in_specs=[
                pl.BlockSpec((TM, D), lambda i: (i, 0)),   # x tile (pipelined)
                pl.BlockSpec((D, D), lambda i: (0, 0)),    # weight (resident)
                pl.BlockSpec((1, D), lambda i: (0, 0)),    # bias   (resident)
            ],
            out_specs=pl.BlockSpec((TM, D), lambda i: (i, 0)),
        ),
        compiler_params=pltpu.CompilerParams(
            dimension_semantics=("parallel",),
            vmem_limit_bytes=vmem_limit,
        ),
        input_output_aliases={0: 0},   # donate the caller's activation buffer
        cost_estimate=cost,
    )(x2, w_m, b2)

    return out.reshape(B, S, D)


if __name__ == "__main__":
    key = jax.random.PRNGKey(0)

    # --- Test 1: small ViT-style tokens, single full-extent block ---
    kx, kw, kb = jax.random.split(key, 3)
    B, S, D = 2, 8, 32
    x = jax.random.normal(kx, (B, S, D), dtype=jnp.float32)
    # Deterministic Linear(D, D) parameters (synthetic, not a checkpoint).
    w = jax.random.normal(kw, (D, D), dtype=jnp.float32) * 0.02
    b = jax.random.normal(kb, (D,), dtype=jnp.float32) * 0.02

    out = residual_add_linear(x, w, b)
    jax.block_until_ready(out)

    ref = jnp.einsum("bsd,de->bse", x, w) + b + x   # fn(x) + x, f32 reference
    assert out.shape == ref.shape
    # bf16 MXU matmul -> looser tolerance than pure f32.
    assert jnp.allclose(out, ref, atol=1e-2, rtol=1e-2), "mismatch vs reference (test 1)"

    # --- Test 2: ragged token count (N % TM != 0), exercises masked tail ---
    kx2, kw2, kb2 = jax.random.split(jax.random.PRNGKey(1), 3)
    B2, S2, D2 = 3, 197, 128          # N = 591, TM = 128 -> 5 steps, 79-row tail
    x2 = jax.random.normal(kx2, (B2, S2, D2), dtype=jnp.float32)
    w2 = jax.random.normal(kw2, (D2, D2), dtype=jnp.float32) * 0.02
    b2 = jax.random.normal(kb2, (D2,), dtype=jnp.float32) * 0.02

    out2 = residual_add_linear(x2, w2, b2, tm=128)
    jax.block_until_ready(out2)

    ref2 = jnp.einsum("bsd,de->bse", x2, w2) + b2 + x2
    assert out2.shape == ref2.shape
    assert jnp.allclose(out2, ref2, atol=1e-2, rtol=1e-2), "mismatch vs reference (test 2)"

    # TODO(synk): `fn` in ResidualAdd is an arbitrary nn.Module; only the
    # Linear(D, D) instantiation is fused here.
    print("KERNEL_OK")
</pallas_src>

<mosaic_0001>
module attributes {stable_mosaic.version = 11 : i64} {
  func.func @_residual_linear_kernel(%arg0: i32, %arg1: memref<16x32xf32, #tpu.memory_space<vmem>>, %arg2: memref<32x32xbf16, #tpu.memory_space<vmem>>, %arg3: memref<1x32xf32, #tpu.memory_space<vmem>>, %arg4: memref<16x32xf32, #tpu.memory_space<vmem>>) attributes {dimension_semantics = [#tpu.dimension_semantics<parallel>], iteration_bounds = array<i64: 1>, scalar_prefetch = 0 : i64, scratch_operands = 0 : i64, tpu.core_type = #tpu.core_type<tc>, window_params = [{transform_indices = @transform_0, window_bounds = array<i64: 16, 32>}, {pipeline_mode = #tpu.pipeline_mode<synchronous>, transform_indices = @transform_1, window_bounds = array<i64: 32, 32>}, {pipeline_mode = #tpu.pipeline_mode<synchronous>, transform_indices = @transform_2, window_bounds = array<i64: 1, 32>}, {transform_indices = @transform_3, window_bounds = array<i64: 16, 32>}]} {
    %c0 = arith.constant 0 : index
    %c0_0 = arith.constant 0 : index
    %0 = vector.load %arg1[%c0, %c0_0] : memref<16x32xf32, #tpu.memory_space<vmem>>, vector<16x32xf32>
    %1 = arith.truncf %0 : vector<16x32xf32> to vector<16x32xbf16>
    %c0_1 = arith.constant 0 : index
    %c0_2 = arith.constant 0 : index
    %2 = vector.load %arg2[%c0_1, %c0_2] : memref<32x32xbf16, #tpu.memory_space<vmem>>, vector<32x32xbf16>
    %cst = arith.constant dense<0.000000e+00> : vector<16x32xf32>
    %3 = tpu.matmul %1, %2, %cst {dimension_numbers = #tpu.dot_dimension_numbers<[1], [0], [0], [1], [0, 0, 1, 1], [], []>} : vector<16x32xbf16>, vector<32x32xbf16>, vector<16x32xf32> -> vector<16x32xf32>
    %c0_3 = arith.constant 0 : index
    %c0_4 = arith.constant 0 : index
    %4 = vector.load %arg3[%c0_3, %c0_4] : memref<1x32xf32, #tpu.memory_space<vmem>>, vector<1x32xf32>
    %5 = vector.broadcast %4 : vector<1x32xf32> to vector<16x32xf32>
    %6 = arith.addf %3, %5 : vector<16x32xf32>
    %7 = arith.addf %6, %0 : vector<16x32xf32>
    %c0_5 = arith.constant 0 : index
    %c0_6 = arith.constant 0 : index
    %8 = vector.load %arg4[%c0_5, %c0_6] : memref<16x32xf32, #tpu.memory_space<vmem>>, vector<16x32xf32>
    tpu.vector_store %arg4[%c0_5, %c0_6], %7 {strides = array<i32>} : memref<16x32xf32, #tpu.memory_space<vmem>>, vector<16x32xf32>,
    return
  }
  func.func @transform_0(%arg0: i32) -> (i32, i32) {
    %c0_i32 = arith.constant 0 : i32
    %c0_i32_0 = arith.constant 0 : i32
    return %arg0, %c0_i32 : i32, i32
  }
  func.func @transform_1(%arg0: i32) -> (i32, i32) {
    %c0_i32 = arith.constant 0 : i32
    %c0_i32_0 = arith.constant 0 : i32
    %c0_i32_1 = arith.constant 0 : i32
    return %c0_i32, %c0_i32_0 : i32, i32
  }
  func.func @transform_2(%arg0: i32) -> (i32, i32) {
    %c0_i32 = arith.constant 0 : i32
    %c0_i32_0 = arith.constant 0 : i32
    %c0_i32_1 = arith.constant 0 : i32
    return %c0_i32, %c0_i32_0 : i32, i32
  }
  func.func @transform_3(%arg0: i32) -> (i32, i32) {
    %c0_i32 = arith.constant 0 : i32
    %c0_i32_0 = arith.constant 0 : i32
    return %arg0, %c0_i32 : i32, i32
  }
}

</mosaic_0001>

<llo_original>
// kernel: tpu_custom_call.1
$region0: #{tpu_custom_call.1}
  #allocation0 [shape = 'u32[]', space=smem, size = 0x4, offset = 0x4, fixed_abs, tag = 'smem constant byte address 0x4 - core index']
  #allocation1 [shape = 'u32[144,128]{1,0:T(1,128)}', space=vmem, size = 0x12000, scoped, tag = 'internal scratch']
  %s0 = inlined_call_operand.hbm [shape: f32[16,32], index: 0, kind: input, shape index: {}, may-alias: {0,3}]
  %s1 = inlined_call_operand.vmem [shape: bf16[32,32], index: 1, kind: input, shape index: {}]
  %s2 = inlined_call_operand.vmem [shape: f32[1,32], index: 2, kind: input, shape index: {}]
  %s3 = inlined_call_operand.hbm [shape: f32[16,32], index: 3, kind: output, shape index: {}, may-alias: {0,3}]
  %s4 = sld [smem:[#allocation0]]
  $region26: #{tpu_custom_call.1} parent=0
    _
  %s6 = ssub.s32 1, %s4
  %s7 = scalar_select 0, %s6, %s4
  $region1: #{tpu_custom_call.1} parent=0
    #allocation2 [shape = 'u8[8192]{0}', space=vmem, size = 0x2000, scoped, tag = 'input window, operand 0, single buffered']
    #allocation3 [shape = 's32[1]{0}', space=sflag, size = 0x4, scoped, tag = 'scoped memory for tpu_custom_call.1']
    #allocation4 [shape = 's32[1]{0}', space=sflag, size = 0x4, scoped, tag = 'scoped memory for tpu_custom_call.1']
    #allocation5 [shape = 'u8[8192]{0}', space=vmem, size = 0x2000, scoped, tag = 'output window, operand 0, single buffered']
    %8 = vsyncpa [#allocation3], 0
    %9 = vsyncpa [#allocation4], 0
    // Predicated region
    $region2: #{tpu_custom_call.1} parent=1 // pred_check
      _
    $region3: #{tpu_custom_call.1} parent=1 // pred_check_branch
      %11 = sbr.rel (0) target = $region5
    $region4: #{tpu_custom_call.1} parent=1 // pred_region
      %s13 = ssub.s32 256, 256
      %14 = vsyncadd [#allocation3], %s13
      %s15 = sshll.u32 [#allocation2], 4
      %s16 = int_to_ptr.vmem [resolvable:$true] %s15
      %21 = dma.hbm_to_vmem [thread:$0]  %s0, 256, %s16, [#allocation3], 128, 128, 8
    $region5: #{tpu_custom_call.1} parent=1 // pred_fallthru
      _
    // Predicated region
    $region6: #{tpu_custom_call.1} parent=1 // pred_check
      _
    $region7: #{tpu_custom_call.1} parent=1 // pred_check_branch
      %23 = sbr.rel (0) target = $region9
    $region8: #{tpu_custom_call.1} parent=1 // pred_region
      _
    $region9: #{tpu_custom_call.1} parent=1 // pred_fallthru
      _
    // Predicated region
    $region10: #{tpu_custom_call.1} parent=1 // pred_check
      _
    $region11: #{tpu_custom_call.1} parent=1 // pred_check_branch
      %25 = sbr.rel (0) target = $region13
    $region12: #{tpu_custom_call.1} parent=1 // pred_region
      _
    $region13: #{tpu_custom_call.1} parent=1 // pred_fallthru
      _
    // Predicated region
    $region14: #{tpu_custom_call.1} parent=1 // pred_check
      _
    $region15: #{tpu_custom_call.1} parent=1 // pred_check_branch
      %27 = sbr.rel (0) target = $region17
    $region16: #{tpu_custom_call.1} parent=1 // pred_region
      %28 = dma.done [#allocation3], 256
    $region17: #{tpu_custom_call.1} parent=1 // pred_fallthru
      _
    %v30 = vld [vmem:[#allocation2] sm:$0xff]
    %v31 = vld [vmem:[#allocation2 + $0x8] sm:$0xff]
    %v32 = vpack.c.bf16 %v31, %v30
    %v33 = vld [vmem:[%s1] sm:$0xf]
    %v34 = vld [vmem:[%s1 + $0x4] sm:$0xf]
    %v35 = vld [vmem:[%s1 + $0x8] sm:$0xf]
    %v36 = vld [vmem:[%s1 + $0xc] sm:$0xf]
    %v37 = vld [vmem:[%s2] sm:$0x1]
    %v39 = vlaneseq
    %v40 = vshrl.u32 %v39, 7
    %v41 = vsub.s32 0, %v40
    %v42 = vrot.slane %v37, %v41
    %v48 = vunpack.c.l.b16 %v33
    %v49 = vunpack.c.l.b16 %v34
    %v50 = vunpack.c.l.b16 %v35
    %v51 = vunpack.c.l.b16 %v36
    %v52 = vpack.c.b16 %v49, %v48
    %v53 = vpack.c.b16 %v51, %v50
    %vm56 = vcmask 261120
    %v58 = vsel %vm56, %v32, 0
    %60 = vmatprep.subr.bf16.mxu0 0
    %61 = vmatpush1.bf16.msra.mxu0 0
    %62 = vmatprep.subr.bf16.mxu0 0
    %63 = vmatpush1.bf16.msra.mxu0 0
    %64 = vmatprep.subr.bf16.mxu0 0
    %65 = vmatpush1.bf16.msra.mxu0 0
    %66 = vmatprep.subr.bf16.mxu0 0
    %67 = vmatpush1.bf16.msra.mxu0 0
    %68 = vmatprep.subr.bf16.mxu0 0
    %69 = vmatpush1.bf16.msra.mxu0 0
    %70 = vmatprep.subr.bf16.mxu0 0
    %71 = vmatpush1.bf16.msra.mxu0 0
    %72 = vmatprep.subr.bf16.mxu0 0
    %73 = vmatpush1.bf16.msra.mxu0 %v53
    %74 = vmatprep.subr.bf16.mxu0 0
    %75 = vmatpush1.bf16.msra.mxu0 %v52
    %76 = vmatprep.subr.bf16.mxu0 0
    %77 = vmatpush2.bf16.msra.mxu0 0
    %78 = vmatprep.subr.bf16.mxu0 0
    %79 = vmatpush2.bf16.msra.mxu0 0
    %80 = vmatprep.subr.bf16.mxu0 0
    %81 = vmatpush2.bf16.msra.mxu0 0
    %82 = vmatprep.subr.bf16.mxu0 0
    %83 = vmatpush2.bf16.msra.mxu0 0
    %84 = vmatprep.subr.bf16.mxu0 0
    %85 = vmatpush2.bf16.msra.mxu0 0
    %86 = vmatprep.subr.bf16.mxu0 0
    %87 = vmatpush2.bf16.msra.mxu0 0
    %88 = vmatprep.subr.bf16.mxu0 0
    %89 = vmatpush2.bf16.msra.mxu0 0
    %90 = vmatprep.subr.bf16.mxu0 0
    %91 = vmatpush2.bf16.msra.mxu0 0
    %92 = vmatprep.mubr.bf16.mxu0 0
    %93 = vmatmul.mubr.bf16.gmra.mxu0 %v58
    %v94 = vpop.f32.mrf.mxu0
    %v95 = vadd.f32 %v42, %v94
    %v96 = vpop.f32.mrf.mxu0
    %v97 = vpop.f32.mrf.mxu0
    %v98 = vadd.f32 %v42, %v97
    %v99 = vpop.f32.mrf.mxu0
    %100 = vdwg.mxu0
    %v101 = vadd.f32 %v95, %v30
    %v102 = vadd.f32 %v98, %v31
    %103 = vst.msk [vmem:[#allocation5] sm:$0xff] %vm56, %v101
    %104 = vst.msk [vmem:[#allocation5 + $0x8] sm:$0xff] %vm56, %v102
    // Predicated region
    $region18: #{tpu_custom_call.1} parent=1 // pred_check
      _
    $region19: #{tpu_custom_call.1} parent=1 // pred_check_branch
      %106 = sbr.rel (0) target = $region21
    $region20: #{tpu_custom_call.1} parent=1 // pred_region
      %s108 = ssub.s32 256, 256
      %109 = vsyncadd [#allocation4], %s108
      %s110 = sshll.u32 [#allocation5], 4
      %s111 = int_to_ptr.vmem [resolvable:$true] %s110
      %116 = dma.vmem_to_hbm [thread:$0]  %s111, 256, %s3, [#allocation4], 128, 128, 8
    $region21: #{tpu_custom_call.1} parent=1 // pred_fallthru
      _
    // Predicated region
    $region22: #{tpu_custom_call.1} parent=1 // pred_check
      _
    $region23: #{tpu_custom_call.1} parent=1 // pred_check_branch
      %118 = sbr.rel (0) target = $region25
    $region24: #{tpu_custom_call.1} parent=1 // pred_region
      %119 = dma.done [#allocation4], 256
    $region25: #{tpu_custom_call.1} parent=1 // pred_fallthru
      _
    %120 = vsyncpa [#allocation3], 1
    %121 = vsyncpa [#allocation4], 1

</llo_original>
